<compile_context>
chip_gen: v5e
topology: v5e:2x2
jax: 0.10.0
libtpu: 0.0.40
codegen_flags: <defaults>
</compile_context>

<pallas_src>
import functools

import jax
import jax.numpy as jnp
from jax.experimental import pallas as pl
from jax.experimental.pallas import tpu as pltpu


def _label_smoothing_kernel(pred_ref, target_ref, out_ref, *,
                            confidence, smooth_val, ignore_index,
                            n_rows, tile_n, ragged):
    pred = pred_ref[...]                                 # (tile_n, C) streamed dtype
    tgt = target_ref[...]                                # (tile_n, 1) int32

    if not jnp.issubdtype(pred.dtype, jnp.floating):
        pred = pred.astype(jnp.float32)

    # log-softmax pieces; max/shift stay in the streamed dtype, rest in f32.
    m = jnp.max(pred, axis=-1, keepdims=True)
    shifted = (pred - m).astype(jnp.float32)             # (tile_n, C) f32
    lse = jnp.log(jnp.sum(jnp.exp(shifted), axis=-1, keepdims=True))  # (tile_n, 1)

    # Fused loss: true_dist weights sum to exactly 1, hence
    #   -sum_c(true_dist_c * logp_c) = lse - sum_c(w_c * shifted_c)
    # with w_c = confidence at the target column, smooth_val elsewhere.
    col_idx = jax.lax.broadcasted_iota(jnp.int32, shifted.shape, 1)
    w = jnp.where(col_idx == tgt,
                  jnp.float32(confidence), jnp.float32(smooth_val))
    per_row = lse - jnp.sum(w * shifted, axis=-1, keepdims=True)      # (tile_n, 1)

    # rows with target == ignore_index contribute 0 (still counted in mean)
    per_row = jnp.where(tgt == ignore_index, 0.0, per_row)

    if ragged:
        # Mask padded rows of the ragged last tile.  Keep this a select so
        # NaN/Inf from unspecified padded rows cannot propagate.
        i = pl.program_id(0)
        row_idx = jax.lax.broadcasted_iota(jnp.int32, per_row.shape, 0)
        per_row = jnp.where(row_idx < n_rows - i * tile_n, per_row, 0.0)

    out_ref[0, 0] = jnp.sum(per_row)


def label_smoothing_loss(pred, target, *, classes, smoothing=0.0,
                         ignore_index=-100, tile_n=None):
    """Pallas implementation of LabelSmoothingLoss.forward.

    pred:   (N, C) float (f32 or bf16; streamed in its native dtype)
    target: (N,) int
    returns scalar float32 loss
    """
    n, c = pred.shape
    assert c == classes
    confidence = 1.0 - smoothing
    smooth_val = smoothing / (classes - 1)
    itemsize = jnp.dtype(pred.dtype).itemsize

    # Per-generation VMEM capacity (64 MiB on v7x, 128 MiB on v5e/v6e).
    try:
        vmem_cap = int(pltpu.get_tpu_info().vmem_capacity_bytes)
    except Exception:
        vmem_cap = 64 * 1024 * 1024   # conservative fallback

    # Working-set accounting: 2x double-buffered src block + ~6 full-tile
    # f32 temporaries (shifted, exp, iota, weights, product, slack).
    per_row_bytes = 2 * c * itemsize + 6 * c * 4
    budget = max(per_row_bytes, int(0.80 * vmem_cap) - (2 << 20))

    if tile_n is None:
        # ~4 MiB streamed pred block, bounded by the VMEM working-set budget.
        tile_n = (4 * 1024 * 1024) // max(1, c * itemsize)
        tile_n = min(tile_n, budget // per_row_bytes)
        tile_n = max(tile_n, 1)
    tile_n = int(min(tile_n, n))
    if tile_n < n:
        # blocked row dim must be a multiple of 8 (or equal the full dim)
        tile_n = max(8, (tile_n // 8) * 8)
        tile_n = min(tile_n, n)

    num_tiles = pl.cdiv(n, tile_n)
    ragged = (n % tile_n) != 0

    target2d = target.reshape(n, 1).astype(jnp.int32)

    kernel = functools.partial(
        _label_smoothing_kernel,
        confidence=confidence,
        smooth_val=smooth_val,
        ignore_index=ignore_index,
        n_rows=n,
        tile_n=tile_n,
        ragged=ragged,
    )

    src_block = tile_n * c * itemsize
    f32_block = tile_n * c * 4
    vmem_needed = 2 * src_block + 6 * f32_block + (2 << 20)
    vmem_limit = int(min(max(vmem_needed, 32 * 1024 * 1024),
                         int(0.90 * vmem_cap)))

    partials = pl.pallas_call(
        kernel,
        out_shape=jax.ShapeDtypeStruct((num_tiles, 1), jnp.float32),
        grid=(num_tiles,),
        in_specs=[
            pl.BlockSpec((tile_n, c), lambda i: (i, 0)),   # pred row tile
            pl.BlockSpec((tile_n, 1), lambda i: (i, 0)),   # target row tile
        ],
        out_specs=pl.BlockSpec((1, 1), lambda i: (i, 0),
                               memory_space=pltpu.SMEM),
        compiler_params=pltpu.CompilerParams(
            dimension_semantics=("parallel",),
            vmem_limit_bytes=vmem_limit,
        ),
    )(pred, target2d)

    return jnp.sum(partials) * jnp.float32(1.0 / n)


def _reference_loss(pred, target, *, classes, smoothing, ignore_index):
    """Pure-JAX reference mirroring the PyTorch module exactly."""
    confidence = 1.0 - smoothing
    logp = jax.nn.log_softmax(pred.astype(jnp.float32), axis=-1)
    is_ignore = target == ignore_index
    tgt = jnp.where(is_ignore, 0, target)
    true_dist = jnp.full_like(logp, smoothing / (classes - 1))
    true_dist = true_dist.at[jnp.arange(pred.shape[0]), tgt].set(confidence)
    true_dist = jnp.where(is_ignore[:, None], 0.0, true_dist)
    return jnp.mean(jnp.sum(-true_dist * logp, axis=-1))


if __name__ == "__main__":
    smoothing = 0.1
    ignore_index = -100
    key = jax.random.PRNGKey(0)

    # Case 1: small shapes, single tile (N=8, C=32)
    N, C = 8, 32
    k_pred, k_tgt = jax.random.split(key)
    pred = jax.random.normal(k_pred, (N, C), dtype=jnp.float32)
    target = jax.random.randint(k_tgt, (N,), 0, C, dtype=jnp.int32)
    target = target.at[1].set(ignore_index).at[5].set(ignore_index)

    loss = label_smoothing_loss(
        pred, target, classes=C, smoothing=smoothing, ignore_index=ignore_index
    )
    loss = jax.block_until_ready(loss)
    ref = _reference_loss(
        pred, target, classes=C, smoothing=smoothing, ignore_index=ignore_index
    )
    assert jnp.allclose(loss, ref, atol=1e-5, rtol=1e-5), (loss, ref)

    # Case 2: multi-tile parallel grid with a ragged last tile (N=20, tile_n=8)
    N2, C2 = 20, 32
    k_pred2, k_tgt2 = jax.random.split(k_pred)
    pred2 = jax.random.normal(k_pred2, (N2, C2), dtype=jnp.float32)
    target2 = jax.random.randint(k_tgt2, (N2,), 0, C2, dtype=jnp.int32)
    target2 = target2.at[3].set(ignore_index).at[17].set(ignore_index)

    loss2 = label_smoothing_loss(
        pred2, target2, classes=C2, smoothing=smoothing,
        ignore_index=ignore_index, tile_n=8,
    )
    loss2 = jax.block_until_ready(loss2)
    ref2 = _reference_loss(
        pred2, target2, classes=C2, smoothing=smoothing,
        ignore_index=ignore_index,
    )
    assert jnp.allclose(loss2, ref2, atol=1e-5, rtol=1e-5), (loss2, ref2)

    print("KERNEL_OK")
</pallas_src>

<mosaic_0001>
module attributes {stable_mosaic.version = 11 : i64} {
  func.func @_label_smoothing_kernel(%arg0: i32, %arg1: memref<8x32xf32, #tpu.memory_space<vmem>>, %arg2: memref<8x1xi32, #tpu.memory_space<vmem>>, %arg3: memref<1x1xf32, #tpu.memory_space<smem>>) attributes {dimension_semantics = [#tpu.dimension_semantics<parallel>], iteration_bounds = array<i64: 1>, scalar_prefetch = 0 : i64, scratch_operands = 0 : i64, tpu.core_type = #tpu.core_type<tc>, window_params = [{transform_indices = @transform_0, window_bounds = array<i64: 8, 32>}, {transform_indices = @transform_1, window_bounds = array<i64: 8, 1>}, {transform_indices = @transform_2, window_bounds = array<i64: 1, 1>}]} {
    %c0 = arith.constant 0 : index
    %c0_0 = arith.constant 0 : index
    %0 = vector.load %arg1[%c0, %c0_0] : memref<8x32xf32, #tpu.memory_space<vmem>>, vector<8x32xf32>
    %c0_1 = arith.constant 0 : index
    %c0_2 = arith.constant 0 : index
    %1 = vector.load %arg2[%c0_1, %c0_2] : memref<8x1xi32, #tpu.memory_space<vmem>>, vector<8x1xi32>
    %cst = arith.constant dense<0xFF800000> : vector<8xf32>
    %2 = vector.multi_reduction <maximumf>, %0, %cst [1] : vector<8x32xf32> to vector<8xf32>
    %3 = vector.shape_cast %2 : vector<8xf32> to vector<8x1xf32>
    %4 = vector.broadcast %3 : vector<8x1xf32> to vector<8x32xf32>
    %5 = arith.subf %0, %4 : vector<8x32xf32>
    %6 = math.exp %5 : vector<8x32xf32>
    %cst_3 = arith.constant dense<0.000000e+00> : vector<8xf32>
    %7 = vector.multi_reduction <add>, %6, %cst_3 [1] : vector<8x32xf32> to vector<8xf32>
    %8 = vector.shape_cast %7 : vector<8xf32> to vector<8x1xf32>
    %9 = math.log %8 : vector<8x1xf32>
    %10 = tpu.iota {dimensions = array<i32: 1>} : vector<8x32xi32>
    %11 = vector.broadcast %1 : vector<8x1xi32> to vector<8x32xi32>
    %12 = arith.cmpi eq, %10, %11 : vector<8x32xi32>
    %cst_4 = arith.constant 0.899999976 : f32
    %cst_5 = arith.constant 0.0032258064 : f32
    %13 = vector.broadcast %cst_4 : f32 to vector<8x32xf32>
    %14 = vector.broadcast %cst_5 : f32 to vector<8x32xf32>
    %15 = arith.select %12, %13, %14 : vector<8x32xi1>, vector<8x32xf32>
    %16 = arith.mulf %15, %5 : vector<8x32xf32>
    %cst_6 = arith.constant dense<0.000000e+00> : vector<8xf32>
    %17 = vector.multi_reduction <add>, %16, %cst_6 [1] : vector<8x32xf32> to vector<8xf32>
    %18 = vector.shape_cast %17 : vector<8xf32> to vector<8x1xf32>
    %19 = arith.subf %9, %18 : vector<8x1xf32>
    %c-100_i32 = arith.constant -100 : i32
    %20 = vector.broadcast %c-100_i32 : i32 to vector<8x1xi32>
    %21 = arith.cmpi eq, %1, %20 : vector<8x1xi32>
    %cst_7 = arith.constant 0.000000e+00 : f32
    %22 = vector.broadcast %cst_7 : f32 to vector<8x1xf32>
    %23 = arith.select %21, %22, %19 : vector<8x1xi1>, vector<8x1xf32>
    %24 = vector.shape_cast %23 : vector<8x1xf32> to vector<1x8x1xf32>
    %cst_8 = arith.constant dense<0.000000e+00> : vector<1xf32>
    %25 = vector.multi_reduction <add>, %24, %cst_8 [1, 2] : vector<1x8x1xf32> to vector<1xf32>
    %26 = vector.shape_cast %25 : vector<1xf32> to vector<1x1x1xf32>
    %27 = vector.extract %26[0, 0, 0] : f32 from vector<1x1x1xf32>
    %c0_9 = arith.constant 0 : index
    %c0_10 = arith.constant 0 : index
    %28 = memref.load %arg3[%c0_9, %c0_10] : memref<1x1xf32, #tpu.memory_space<smem>>
    memref.store %27, %arg3[%c0_9, %c0_10] : memref<1x1xf32, #tpu.memory_space<smem>>
    return
  }
  func.func @transform_0(%arg0: i32) -> (i32, i32) {
    %c0_i32 = arith.constant 0 : i32
    %c0_i32_0 = arith.constant 0 : i32
    return %arg0, %c0_i32 : i32, i32
  }
  func.func @transform_1(%arg0: i32) -> (i32, i32) {
    %c0_i32 = arith.constant 0 : i32
    %c0_i32_0 = arith.constant 0 : i32
    return %arg0, %c0_i32 : i32, i32
  }
  func.func @transform_2(%arg0: i32) -> (i32, i32) {
    %c0_i32 = arith.constant 0 : i32
    %c0_i32_0 = arith.constant 0 : i32
    return %arg0, %c0_i32 : i32, i32
  }
}

</mosaic_0001>

<llo_original>
// kernel: tpu_custom_call.1
$region0: #{tpu_custom_call.1}
  #allocation0 [shape = 'u32[]', space=smem, size = 0x4, offset = 0x4, fixed_abs, tag = 'smem constant byte address 0x4 - core index']
  #allocation1 [shape = 'u32[72,128]{1,0:T(1,128)}', space=vmem, size = 0x9000, scoped, tag = 'internal scratch']
  %s0 = inlined_call_operand.vmem [shape: f32[8,32], index: 0, kind: input, shape index: {}]
  %s1 = inlined_call_operand.vmem [shape: s32[8,1], index: 1, kind: input, shape index: {}]
  %s2 = inlined_call_operand.hbm [shape: f32[1,1], index: 2, kind: output, shape index: {}]
  %s3 = sld [smem:[#allocation0]]
  $region18: #{tpu_custom_call.1} parent=0
    _
  %s5 = ssub.s32 1, %s3
  %s6 = scalar_select 0, %s5, %s3
  $region1: #{tpu_custom_call.1} parent=0
    #allocation2 [shape = 'u8[512]{0}', space=smem, size = 0x200, scoped, tag = 'output window, operand 0, single buffered']
    #allocation3 [shape = 's32[1]{0}', space=sflag, size = 0x4, scoped, tag = 'scoped memory for tpu_custom_call.1']
    %7 = vsyncpa [#allocation3], 0
    // Predicated region
    $region2: #{tpu_custom_call.1} parent=1 // pred_check
      _
    $region3: #{tpu_custom_call.1} parent=1 // pred_check_branch
      %9 = sbr.rel (0) target = $region5
    $region4: #{tpu_custom_call.1} parent=1 // pred_region
      _
    $region5: #{tpu_custom_call.1} parent=1 // pred_fallthru
      _
    // Predicated region
    $region6: #{tpu_custom_call.1} parent=1 // pred_check
      _
    $region7: #{tpu_custom_call.1} parent=1 // pred_check_branch
      %11 = sbr.rel (0) target = $region9
    $region8: #{tpu_custom_call.1} parent=1 // pred_region
      _
    $region9: #{tpu_custom_call.1} parent=1 // pred_fallthru
      _
    %v12 = vld [vmem:[%s0] sm:$0xff]
    %v13 = vld [vmem:[%s1] sm:$0xff]
    %vm14 = vcmask 261120
    %v15 = vsel %vm14, %v12, -inf
    %16 = vmax.xlane.f32.xlu0 %v15
    %v17 = vpop.xlane.xlu0 %16
    %v18 = vsub.f32 %v12, %v17
    %v19 = vmul.f32 %v18, 1.442695
    %v20 = vpow.pop %v19
    %v21 = vsel %vm14, %v20, 0.0
    %22 = vadd.xlane.f32.xlu0 %v21
    %v23 = vpop.xlane.xlu0 %22
    %v24 = vlog2.pop %v23
    %v25 = vmul.f32 %v24, 0.6931472
    %v26 = vlaneseq
    %v27 = vand.u32 %v26, 127
    %28 = vset.pattern.permute.xlu0 0
    %29 = vperm.xlu0 %28, %v13
    %v30 = vpop.permute.xlu0 %29
    %vm31 = vcmp.eq.s32.totalorder %v27, %v30
    %v32 = vsel %vm31, 0.9, 0.0032258064
    %v33 = vmul.f32 %v32, %v18
    %v34 = vsel %vm14, %v33, 0.0
    %35 = vadd.xlane.f32.xlu0 %v34
    %v36 = vpop.xlane.xlu0 %35
    %v37 = vsub.f32 %v25, %v36
    %vm38 = vcmp.eq.s32.totalorder %v13, 4294967196
    %v39 = vsel %vm38, 0.0, %v37
    %vm40 = vcmask 7168
    %v41 = vsel %vm40, %v39, 0.0
    %42 = vadd.xlane.f32.xlu0 %v41
    %v43 = vpop.xlane.xlu0 %42
    %v44 = vrot.slane %v43, 4
    %v45 = vadd.f32 %v43, %v44
    %v46 = vrot.slane %v45, 2
    %v47 = vadd.f32 %v45, %v46
    %v48 = vrot.slane %v47, 1
    %v49 = vadd.f32 %v47, %v48
    %s50 = vtos %v49
    %s51 = scalar_lea.smem [#allocation2], 0
    %52 = sst [smem:[%s51]] %s50
    // Predicated region
    $region10: #{tpu_custom_call.1} parent=1 // pred_check
      _
    $region11: #{tpu_custom_call.1} parent=1 // pred_check_branch
      %54 = sbr.rel (0) target = $region13
    $region12: #{tpu_custom_call.1} parent=1 // pred_region
      %56 = vsyncadd [#allocation3], 0
      %s58 = sshll.u32 %s2, 4
      %s59 = int_to_ptr.hbm [resolvable:$true] %s58
      %61 = dma.smem_to_hbm [#allocation2], 16, %s59, [#allocation3]
    $region13: #{tpu_custom_call.1} parent=1 // pred_fallthru
      _
    // Predicated region
    $region14: #{tpu_custom_call.1} parent=1 // pred_check
      _
    $region15: #{tpu_custom_call.1} parent=1 // pred_check_branch
      %63 = sbr.rel (0) target = $region17
    $region16: #{tpu_custom_call.1} parent=1 // pred_region
      %65 = dma.done [#allocation3], 16
    $region17: #{tpu_custom_call.1} parent=1 // pred_fallthru
      _
    %66 = sfence
    %67 = vsyncpa [#allocation3], 1

</llo_original>
